<compile_context>
chip_gen: v7x
topology: tpu7x:2x2x1
jax: 0.10.0
libtpu: 0.0.40
codegen_flags: <defaults>
</compile_context>

<pallas_src>
import functools
import math

import jax
import jax.numpy as jnp
from jax.experimental import pallas as pl
from jax.experimental.pallas import tpu as pltpu


def _pick_tile(dim, candidates):
    """Largest candidate that evenly divides `dim`, else the full dim."""
    for c in candidates:
        if dim >= c and dim % c == 0:
            return c
    return dim


@functools.lru_cache(maxsize=None)
def _vmem_limit_bytes():
    cap = 64 * 1024 * 1024          # conservative fallback (v7x per-core VMEM)
    try:
        info = pltpu.get_tpu_info()
        cap = int(getattr(info, "vmem_capacity_bytes", cap))
    except Exception:
        pass
    return min((cap * 3) // 4, 64 * 1024 * 1024)


# --------------------------- linear projections ------------------------------
def _linear_kernel(x_ref, w_ref, b_ref, o_ref, acc_ref):
    k = pl.program_id(2)

    @pl.when(k == 0)
    def _init():
        acc_ref[...] = jnp.zeros_like(acc_ref)

    acc_ref[...] += jnp.dot(x_ref[...], w_ref[...],
                            preferred_element_type=jnp.float32)

    @pl.when(k == pl.num_programs(2) - 1)
    def _finalize():
        o_ref[...] = (acc_ref[...] + b_ref[...]).astype(o_ref.dtype)


def pallas_linear(x2d, w, b, *, out_dtype=jnp.float32):
    """(M,K) @ (K,N) + (N,).  bf16 MXU inputs, f32 accumulation."""
    M, K = x2d.shape
    N = w.shape[1]
    tm = _pick_tile(M, (512, 256, 128, 64, 32, 16, 8))
    tn = _pick_tile(N, (512, 256, 128))
    tk = _pick_tile(K, (512, 256, 128))

    xb = x2d.astype(jnp.bfloat16)
    wb = w.astype(jnp.bfloat16)
    b2 = b.reshape(1, N).astype(jnp.float32)

    return pl.pallas_call(
        _linear_kernel,
        out_shape=jax.ShapeDtypeStruct((M, N), out_dtype),
        grid=(M // tm, N // tn, K // tk),
        in_specs=[
            pl.BlockSpec((tm, tk), lambda i, j, k: (i, k)),
            pl.BlockSpec((tk, tn), lambda i, j, k: (k, j)),
            pl.BlockSpec((1, tn), lambda i, j, k: (0, j)),
        ],
        out_specs=pl.BlockSpec((tm, tn), lambda i, j, k: (i, j)),
        scratch_shapes=[pltpu.VMEM((tm, tn), jnp.float32)],
        compiler_params=pltpu.CompilerParams(
            dimension_semantics=("parallel", "parallel", "arbitrary"),
            vmem_limit_bytes=_vmem_limit_bytes()),
    )(xb, wb, b2)


def _linear_qkv_kernel(x_ref, w_ref, b_ref, q_ref, k_ref, v_ref, acc_ref):
    # One activation read, three stacked weight blocks, three dense outputs
    # (avoids a packed (M, 3N) output that would need last-dim slice copies).
    kk = pl.program_id(2)

    @pl.when(kk == 0)
    def _init():
        acc_ref[...] = jnp.zeros_like(acc_ref)

    x = x_ref[...]
    for g in range(3):
        acc_ref[g] += jnp.dot(x, w_ref[g], preferred_element_type=jnp.float32)

    @pl.when(kk == pl.num_programs(2) - 1)
    def _finalize():
        q_ref[...] = (acc_ref[0] + b_ref[0]).astype(q_ref.dtype)
        k_ref[...] = (acc_ref[1] + b_ref[1]).astype(k_ref.dtype)
        v_ref[...] = (acc_ref[2] + b_ref[2]).astype(v_ref.dtype)


def pallas_linear_qkv(x2d, w_stack, b_stack, *, out_dtype=jnp.bfloat16):
    """x(M,K) against stacked weights (3,K,N) -> three (M,N) outputs."""
    M, K = x2d.shape
    N = w_stack.shape[-1]
    tm = _pick_tile(M, (512, 256, 128, 64, 32, 16, 8))
    tn = _pick_tile(N, (512, 256, 128))
    tk = _pick_tile(K, (512, 256, 128))

    xb = x2d.astype(jnp.bfloat16)
    wb = w_stack.astype(jnp.bfloat16)
    b3 = b_stack.reshape(3, 1, N).astype(jnp.float32)
    out_sd = jax.ShapeDtypeStruct((M, N), out_dtype)

    return pl.pallas_call(
        _linear_qkv_kernel,
        out_shape=(out_sd, out_sd, out_sd),
        grid=(M // tm, N // tn, K // tk),
        in_specs=[
            pl.BlockSpec((tm, tk), lambda i, j, k: (i, k)),
            pl.BlockSpec((3, tk, tn), lambda i, j, k: (0, k, j)),
            pl.BlockSpec((3, 1, tn), lambda i, j, k: (0, 0, j)),
        ],
        out_specs=(pl.BlockSpec((tm, tn), lambda i, j, k: (i, j)),) * 3,
        scratch_shapes=[pltpu.VMEM((3, tm, tn), jnp.float32)],
        compiler_params=pltpu.CompilerParams(
            dimension_semantics=("parallel", "parallel", "arbitrary"),
            vmem_limit_bytes=_vmem_limit_bytes()),
    )(xb, wb, b3)


# ------------------- circular auto-correlation (period deps) ----------------
def _autocorr_kernel(cf_ref, sf_ref, wi_ref, *refs, inv_c, with_corr):
    # corr[tau, c] = sum_t q[(t + tau) % L, c] * k[t, c]
    #             == irfft(rfft(q, time) * conj(rfft(k, time)))
    # implemented as half-spectrum real-DFT matmuls on the MXU (bf16 inputs,
    # f32 accumulation).  cf/sf are (Lf, L) forward bases; wi is the (Lf, 1)
    # Hermitian weight column w[f]/L used by the inverse transform.
    if with_corr:
        ci_ref, si_ref, q_ref, k_ref, corr_ref, mean_ref, prsum, pisum = refs
    else:
        q_ref, k_ref, mean_ref, prsum, pisum = refs

    c_idx = pl.program_id(1)
    cf = cf_ref[...]                        # (Lf, L) bf16
    sf = sf_ref[...]                        # (Lf, L) bf16
    q = q_ref[0]                            # (L, ct) bf16
    k = k_ref[0]
    ct = q.shape[-1]

    # forward real DFT of q and k; fuse into one MXU pass per basis whenever
    # the channel tile is lane-aligned.
    if ct % 128 == 0:
        qk = jnp.concatenate([q, k], axis=-1)                       # (L, 2ct)
        c_qk = jnp.dot(cf, qk, preferred_element_type=jnp.float32)  # (Lf, 2ct)
        s_qk = jnp.dot(sf, qk, preferred_element_type=jnp.float32)
        qc, kc = c_qk[:, :ct], c_qk[:, ct:]
        qs, ks = s_qk[:, :ct], s_qk[:, ct:]
    else:
        qc = jnp.dot(cf, q, preferred_element_type=jnp.float32)
        qs = jnp.dot(sf, q, preferred_element_type=jnp.float32)
        kc = jnp.dot(cf, k, preferred_element_type=jnp.float32)
        ks = jnp.dot(sf, k, preferred_element_type=jnp.float32)

    # Q(f) * conj(K(f)) with Q = Qc - i*Qs, K = Kc - i*Ks   (f32 on the VPU)
    pr = qc * kc + qs * ks
    pim = qc * ks - qs * kc

    @pl.when(c_idx == 0)
    def _init():
        prsum[...] = jnp.zeros_like(prsum)
        pisum[...] = jnp.zeros_like(pisum)

    prsum[...] += jnp.sum(pr, axis=-1, keepdims=True)
    pisum[...] += jnp.sum(pim, axis=-1, keepdims=True)

    if with_corr:
        # inverse half-spectrum DFT per channel tile (bf16 MXU, f32 accumulate)
        corr = (jnp.dot(ci_ref[...], pr.astype(jnp.bfloat16),
                        preferred_element_type=jnp.float32)
                - jnp.dot(si_ref[...], pim.astype(jnp.bfloat16),
                          preferred_element_type=jnp.float32))
        corr_ref[0] = corr.astype(corr_ref.dtype)

    @pl.when(c_idx == pl.num_programs(1) - 1)
    def _finalize():
        # channel mean via the channel-summed spectrum: the inverse transform
        # is applied once per batch and emitted lane-dense as a (1, L) row.
        wi = wi_ref[...]                                 # (Lf, 1) = w[f] / L
        pw = prsum[...] * wi
        iw = pisum[...] * wi
        mean_row = (jnp.sum(cf.astype(jnp.float32) * pw, axis=0, keepdims=True)
                    - jnp.sum(sf.astype(jnp.float32) * iw, axis=0,
                              keepdims=True))
        mean_ref[0] = mean_row * inv_c


def pallas_autocorr(q_blc, k_blc, *, with_corr=True):
    B, L, C = q_blc.shape
    c_tile = _pick_tile(C, (256, 128))
    n_cb = C // c_tile

    # half-spectrum (rfft-sized) real-DFT bases, zero-padded to a sublane
    # multiple; shared constants resident across the whole grid.
    Lf = L // 2 + 1
    Lf_pad = max(8, ((Lf + 7) // 8) * 8)
    f = jnp.arange(Lf_pad, dtype=jnp.float32)
    t = jnp.arange(L, dtype=jnp.float32)
    valid = f < Lf
    ang_f = (2.0 * math.pi / L) * (f[:, None] * t[None, :])        # (Lf, L)
    cf = jnp.where(valid[:, None], jnp.cos(ang_f), 0.0).astype(jnp.bfloat16)
    sf = jnp.where(valid[:, None], jnp.sin(ang_f), 0.0).astype(jnp.bfloat16)
    # Hermitian-symmetry weights: 1 for DC (and Nyquist if L even), 2 interior.
    w = jnp.full((Lf_pad,), 2.0, jnp.float32)
    w = w.at[0].set(1.0)
    if L % 2 == 0:
        w = w.at[L // 2].set(1.0)
    w = jnp.where(valid, w, 0.0)
    wi = (w / L).reshape(Lf_pad, 1)                                 # f32

    qb = q_blc.astype(jnp.bfloat16)
    kb = k_blc.astype(jnp.bfloat16)

    kern = functools.partial(_autocorr_kernel, inv_c=1.0 / C,
                             with_corr=with_corr)

    basis_spec = pl.BlockSpec((Lf_pad, L), lambda b, c: (0, 0))
    wi_spec = pl.BlockSpec((Lf_pad, 1), lambda b, c: (0, 0))
    qk_spec = pl.BlockSpec((1, L, c_tile), lambda b, c: (b, 0, c))
    mean_shape = jax.ShapeDtypeStruct((B, 1, L), jnp.float32)
    mean_spec = pl.BlockSpec((1, 1, L), lambda b, c: (b, 0, 0))

    if with_corr:
        ang_i = (2.0 * math.pi / L) * (t[:, None] * f[None, :])     # (L, Lf)
        ci = (jnp.cos(ang_i) * wi[:, 0][None, :]).astype(jnp.bfloat16)
        si = (jnp.sin(ang_i) * wi[:, 0][None, :]).astype(jnp.bfloat16)
        inv_spec = pl.BlockSpec((L, Lf_pad), lambda b, c: (0, 0))
        in_specs = [basis_spec, basis_spec, wi_spec, inv_spec, inv_spec,
                    qk_spec, qk_spec]
        out_shape = (jax.ShapeDtypeStruct((B, L, C), jnp.float32), mean_shape)
        out_specs = (pl.BlockSpec((1, L, c_tile), lambda b, c: (b, 0, c)),
                     mean_spec)
        args = (cf, sf, wi, ci, si, qb, kb)
    else:
        in_specs = [basis_spec, basis_spec, wi_spec, qk_spec, qk_spec]
        out_shape = mean_shape
        out_specs = mean_spec
        args = (cf, sf, wi, qb, kb)

    return pl.pallas_call(
        kern,
        out_shape=out_shape,
        grid=(B, n_cb),
        in_specs=in_specs,
        out_specs=out_specs,
        scratch_shapes=[pltpu.VMEM((Lf_pad, 1), jnp.float32),
                        pltpu.VMEM((Lf_pad, 1), jnp.float32)],
        compiler_params=pltpu.CompilerParams(
            dimension_semantics=("parallel", "arbitrary"),
            vmem_limit_bytes=_vmem_limit_bytes()),
    )(*args)


# --------------------- time-delay aggregation (inference) -------------------
def _time_delay_agg_kernel(delay_ref, weight_ref, v_ref, o_ref, v2_ref, *,
                           top_k):
    # delay_ref: (B, top_k) int32 in SMEM; weight_ref: (B, top_k) f32 in SMEM.
    # v_ref/o_ref: (1, L, ct); v2_ref: (2L, ct) bf16 scratch (circular double).
    b = pl.program_id(0)
    L = v_ref.shape[1]
    v = v_ref[0]
    v2_ref[pl.ds(0, L), :] = v
    v2_ref[pl.ds(L, L), :] = v

    # fused weighted sum in vregs (f32), one store per tile.
    acc = (v2_ref[pl.ds(delay_ref[b, 0], L), :].astype(jnp.float32)
           * weight_ref[b, 0])
    for i in range(1, top_k):                 # static unroll, top_k ~ log(L)
        acc = acc + (v2_ref[pl.ds(delay_ref[b, i], L), :].astype(jnp.float32)
                     * weight_ref[b, i])
    o_ref[0] = acc.astype(o_ref.dtype)


def pallas_time_delay_agg(v_blc, delays, weights):
    B, L, C = v_blc.shape
    top_k = delays.shape[1]
    c_tile = _pick_tile(C, (256, 128))
    n_cb = C // c_tile
    vb = v_blc.astype(jnp.bfloat16)

    grid_spec = pltpu.PrefetchScalarGridSpec(
        num_scalar_prefetch=2,
        grid=(B, n_cb),
        in_specs=[pl.BlockSpec((1, L, c_tile), lambda b, c, d, w: (b, 0, c))],
        out_specs=pl.BlockSpec((1, L, c_tile), lambda b, c, d, w: (b, 0, c)),
        scratch_shapes=[pltpu.VMEM((2 * L, c_tile), jnp.bfloat16)],
    )
    return pl.pallas_call(
        functools.partial(_time_delay_agg_kernel, top_k=top_k),
        out_shape=jax.ShapeDtypeStruct((B, L, C), jnp.bfloat16),
        grid_spec=grid_spec,
        compiler_params=pltpu.CompilerParams(
            dimension_semantics=("parallel", "parallel"),
            vmem_limit_bytes=_vmem_limit_bytes()),
    )(delays.astype(jnp.int32), weights.astype(jnp.float32), vb)


# ------------------------------- the layer ----------------------------------
class AutoCorrelationLayerPallas:
    """AutoCorrelationLayer with inner_correlation = AutoCorrelation(factor)."""

    def __init__(self, key, d_model, n_heads, d_keys=None, d_values=None,
                 factor=1, output_attention=True):
        d_keys = d_keys or d_model // n_heads
        d_values = d_values or d_model // n_heads
        self.n_heads = n_heads
        self.d_keys = d_keys
        self.d_values = d_values
        self.factor = factor
        self.output_attention = output_attention

        ks = jax.random.split(key, 8)

        def lin(kw, kb, fan_in, fan_out):
            lim = 1.0 / math.sqrt(fan_in)
            w = jax.random.uniform(kw, (fan_in, fan_out), jnp.float32, -lim, lim)
            b = jax.random.uniform(kb, (fan_out,), jnp.float32, -lim, lim)
            return w, b

        self.wq, self.bq = lin(ks[0], ks[1], d_model, d_keys * n_heads)
        self.wk, self.bk = lin(ks[2], ks[3], d_model, d_keys * n_heads)
        self.wv, self.bv = lin(ks[4], ks[5], d_model, d_values * n_heads)
        self.wo, self.bo = lin(ks[6], ks[7], d_values * n_heads, d_model)

    def __call__(self, queries, keys, values, attn_mask=None):
        B, L, d_model = queries.shape
        _, S, _ = keys.shape
        H, E, Dv = self.n_heads, self.d_keys, self.d_values

        # NOTE: object-identity check -- under jit pass the *same* tracer for
        # q/k/v to hit the fused projection path.
        fuse_qkv = (queries is keys) and (keys is values) and (E == Dv)
        if fuse_qkv:
            w_stack = jnp.stack([self.wq, self.wk, self.wv], axis=0)
            b_stack = jnp.stack([self.bq, self.bk, self.bv], axis=0)
            q2d, k2d, v2d = pallas_linear_qkv(
                queries.reshape(B * L, d_model), w_stack, b_stack,
                out_dtype=jnp.bfloat16)
            q = q2d.reshape(B, L, H * E)
            k = k2d.reshape(B, S, H * E)
            v = v2d.reshape(B, S, H * Dv)
        else:
            q = pallas_linear(queries.reshape(B * L, d_model), self.wq, self.bq,
                              out_dtype=jnp.bfloat16).reshape(B, L, H * E)
            k = pallas_linear(keys.reshape(B * S, d_model), self.wk, self.bk,
                              out_dtype=jnp.bfloat16).reshape(B, S, H * E)
            v = pallas_linear(values.reshape(B * S, d_model), self.wv, self.bv,
                              out_dtype=jnp.bfloat16).reshape(B, S, H * Dv)

        # AutoCorrelation length alignment (L vs S) -- plain JAX glue.
        if L > S:
            pad_k = jnp.zeros((B, L - S, k.shape[-1]), k.dtype)
            pad_v = jnp.zeros((B, L - S, v.shape[-1]), v.dtype)
            k = jnp.concatenate([k, pad_k], axis=1)
            v = jnp.concatenate([v, pad_v], axis=1)
        else:
            k = k[:, :L, :]
            v = v[:, :L, :]

        # period-based dependencies (half-spectrum DFT-matmul kernel)
        if self.output_attention:
            corr, mean_value = pallas_autocorr(q, k, with_corr=True)
        else:
            corr = None
            mean_value = pallas_autocorr(q, k, with_corr=False)
        mean_value = mean_value[:, 0, :]                        # (B, L)

        # top-k delays + softmax weights (tiny data-dependent control in JAX)
        top_k = int(self.factor * math.log(L))
        if top_k <= 0:
            agg = jnp.zeros_like(v)
        else:
            weights, delay = jax.lax.top_k(mean_value, top_k)   # (B, top_k)
            tmp_corr = jax.nn.softmax(weights, axis=-1)
            agg = pallas_time_delay_agg(v, delay.astype(jnp.int32), tmp_corr)

        # output projection
        out = pallas_linear(agg.reshape(B * L, H * Dv), self.wo, self.bo,
                            out_dtype=jnp.float32)
        out = out.reshape(B, L, d_model)

        if self.output_attention:
            # torch: corr.permute(0, 3, 1, 2) -> (B, L, H, E)
            attn = corr.reshape(B, L, H, E)
        else:
            attn = None
        return out, attn


# --------------------------------- checks -----------------------------------
def _assert_close(got, ref, rel, name):
    got = jnp.asarray(got, jnp.float32)
    ref = jnp.asarray(ref, jnp.float32)
    scale = float(jnp.maximum(jnp.max(jnp.abs(ref)), 1.0))
    err = float(jnp.max(jnp.abs(got - ref)))
    assert err <= rel * scale, f"{name}: max|err|={err} scale={scale}"


def _validate(layer, queries, keys, values):
    B, L, d_model = queries.shape
    q_p = pallas_linear(queries.reshape(B * L, d_model), layer.wq, layer.bq,
                        out_dtype=jnp.bfloat16).reshape(B, L, -1)
    k_p = pallas_linear(keys.reshape(B * L, d_model), layer.wk, layer.bk,
                        out_dtype=jnp.bfloat16).reshape(B, L, -1)
    corr_p, mean_p = pallas_autocorr(q_p, k_p, with_corr=True)

    qf = jnp.fft.rfft(q_p.astype(jnp.float32), axis=1)
    kf = jnp.fft.rfft(k_p.astype(jnp.float32), axis=1)
    corr_ref = jnp.fft.irfft(qf * jnp.conj(kf), n=L, axis=1)
    mean_ref = jnp.mean(corr_ref, axis=-1)
    _assert_close(corr_p, corr_ref, 3e-2, "corr")
    _assert_close(mean_p[:, 0, :], mean_ref, 3e-2, "mean")

    mean_only = pallas_autocorr(q_p, k_p, with_corr=False)
    _assert_close(mean_only[:, 0, :], mean_ref, 3e-2, "mean_only")

    # time-delay aggregation vs a plain-JAX gather
    v_p = pallas_linear(values.reshape(B * L, d_model), layer.wv, layer.bv,
                        out_dtype=jnp.bfloat16).reshape(B, L, -1)
    top_k = max(int(math.log(L)), 1)
    weights, delay = jax.lax.top_k(mean_p[:, 0, :], top_k)
    tmp_corr = jax.nn.softmax(weights, axis=-1)
    agg_p = pallas_time_delay_agg(v_p, delay.astype(jnp.int32), tmp_corr)

    def _ref_agg(vb, db, wb):
        v32 = vb.astype(jnp.float32)
        acc = jnp.zeros_like(v32)
        for i in range(top_k):
            acc = acc + v32[(jnp.arange(L) + db[i]) % L, :] * wb[i]
        return acc

    agg_ref = jax.vmap(_ref_agg)(v_p, delay, tmp_corr)
    _assert_close(agg_p, agg_ref, 2e-2, "agg")


if __name__ == "__main__":
    key = jax.random.PRNGKey(0)

    # config 1: tiny shapes (sub-lane channel tile, separate-dot DFT path)
    B, L, d_model, n_heads = 2, 8, 32, 4
    kq, kk, kv, kp = jax.random.split(key, 4)
    queries = jax.random.normal(kq, (B, L, d_model), jnp.float32)
    keys = jax.random.normal(kk, (B, L, d_model), jnp.float32)
    values = jax.random.normal(kv, (B, L, d_model), jnp.float32)

    layer = AutoCorrelationLayerPallas(kp, d_model, n_heads,
                                       factor=1, output_attention=True)
    out, attn = layer(queries, keys, values, None)
    jax.block_until_ready((out, attn))
    assert out.shape == (B, L, d_model)
    assert attn.shape == (B, L, n_heads, d_model // n_heads)
    assert bool(jnp.all(jnp.isfinite(out)))

    # fused q/k/v projection path (self-attention: same object for q/k/v)
    out_sa, attn_sa = layer(queries, queries, queries, None)
    jax.block_until_ready((out_sa, attn_sa))
    assert out_sa.shape == (B, L, d_model)
    assert bool(jnp.all(jnp.isfinite(out_sa)))

    # output_attention=False (mean-only correlation kernel) path
    layer_na = AutoCorrelationLayerPallas(kp, d_model, n_heads,
                                          factor=1, output_attention=False)
    out_na, attn_na = layer_na(queries, keys, values, None)
    jax.block_until_ready(out_na)
    assert attn_na is None and out_na.shape == (B, L, d_model)
    assert bool(jnp.all(jnp.isfinite(out_na)))

    _validate(layer, queries, keys, values)

    # config 2: lane-aligned channel tiles (fused q|k DFT matmul, multi c-tile
    # accumulation of the channel-summed spectrum)
    B2, L2, d_model2, n_heads2 = 2, 16, 384, 4
    kq2, kk2, kv2, kp2 = jax.random.split(jax.random.PRNGKey(1), 4)
    queries2 = jax.random.normal(kq2, (B2, L2, d_model2), jnp.float32)
    keys2 = jax.random.normal(kk2, (B2, L2, d_model2), jnp.float32)
    values2 = jax.random.normal(kv2, (B2, L2, d_model2), jnp.float32)
    layer2 = AutoCorrelationLayerPallas(kp2, d_model2, n_heads2,
                                        factor=1, output_attention=True)
    out2, attn2 = layer2(queries2, keys2, values2, None)
    jax.block_until_ready((out2, attn2))
    assert out2.shape == (B2, L2, d_model2)
    assert bool(jnp.all(jnp.isfinite(out2)))
    _validate(layer2, queries2, keys2, values2)

    print("KERNEL_OK")
</pallas_src>

<mosaic_0001>
module attributes {stable_mosaic.version = 11 : i64} {
  func.func @_linear_kernel(%arg0: i32, %arg1: i32, %arg2: i32, %arg3: memref<16x32xbf16, #tpu.memory_space<vmem>>, %arg4: memref<32x32xbf16, #tpu.memory_space<vmem>>, %arg5: memref<1x32xf32, #tpu.memory_space<vmem>>, %arg6: memref<16x32xbf16, #tpu.memory_space<vmem>>, %arg7: memref<16x32xf32, #tpu.memory_space<vmem>>) attributes {dimension_semantics = [#tpu.dimension_semantics<parallel>, #tpu.dimension_semantics<parallel>, #tpu.dimension_semantics<arbitrary>], iteration_bounds = array<i64: 1, 1, 1>, scalar_prefetch = 0 : i64, scratch_operands = 1 : i64, tpu.core_type = #tpu.core_type<tc>, window_params = [{transform_indices = @transform_0, window_bounds = array<i64: 16, 32>}, {transform_indices = @transform_1, window_bounds = array<i64: 32, 32>}, {transform_indices = @transform_2, window_bounds = array<i64: 1, 32>}, {transform_indices = @transform_3, window_bounds = array<i64: 16, 32>}]} {
    %c0_i32 = arith.constant 0 : i32
    %0 = arith.cmpi eq, %arg2, %c0_i32 : i32
    %1 = arith.extui %0 : i1 to i32
    %c0_i32_0 = arith.constant 0 : i32
    %2 = arith.cmpi ne, %1, %c0_i32_0 : i32
    scf.if %2 {
      %cst_10 = arith.constant 0.000000e+00 : f32
      %12 = vector.broadcast %cst_10 : f32 to vector<16x32xf32>
      %c0_11 = arith.constant 0 : index
      %c0_12 = arith.constant 0 : index
      %13 = vector.load %arg7[%c0_11, %c0_12] : memref<16x32xf32, #tpu.memory_space<vmem>>, vector<16x32xf32>
      tpu.vector_store %arg7[%c0_11, %c0_12], %12 {strides = array<i32>} : memref<16x32xf32, #tpu.memory_space<vmem>>, vector<16x32xf32>,
    } else {
    }
    %c0 = arith.constant 0 : index
    %c0_1 = arith.constant 0 : index
    %3 = vector.load %arg7[%c0, %c0_1] : memref<16x32xf32, #tpu.memory_space<vmem>>, vector<16x32xf32>
    %c0_2 = arith.constant 0 : index
    %c0_3 = arith.constant 0 : index
    %4 = vector.load %arg3[%c0_2, %c0_3] : memref<16x32xbf16, #tpu.memory_space<vmem>>, vector<16x32xbf16>
    %c0_4 = arith.constant 0 : index
    %c0_5 = arith.constant 0 : index
    %5 = vector.load %arg4[%c0_4, %c0_5] : memref<32x32xbf16, #tpu.memory_space<vmem>>, vector<32x32xbf16>
    %cst = arith.constant dense<0.000000e+00> : vector<16x32xf32>
    %6 = tpu.matmul %4, %5, %cst {dimension_numbers = #tpu.dot_dimension_numbers<[1], [0], [0], [1], [0, 0, 1, 1], [], []>} : vector<16x32xbf16>, vector<32x32xbf16>, vector<16x32xf32> -> vector<16x32xf32>
    %7 = arith.addf %3, %6 : vector<16x32xf32>
    %c0_6 = arith.constant 0 : index
    %c0_7 = arith.constant 0 : index
    %8 = vector.load %arg7[%c0_6, %c0_7] : memref<16x32xf32, #tpu.memory_space<vmem>>, vector<16x32xf32>
    tpu.vector_store %arg7[%c0_6, %c0_7], %7 {strides = array<i32>} : memref<16x32xf32, #tpu.memory_space<vmem>>, vector<16x32xf32>,
    %c0_i32_8 = arith.constant 0 : i32
    %9 = arith.cmpi eq, %arg2, %c0_i32_8 : i32
    %10 = arith.extui %9 : i1 to i32
    %c0_i32_9 = arith.constant 0 : i32
    %11 = arith.cmpi ne, %10, %c0_i32_9 : i32
    scf.if %11 {
      %c0_10 = arith.constant 0 : index
      %c0_11 = arith.constant 0 : index
      %12 = vector.load %arg7[%c0_10, %c0_11] : memref<16x32xf32, #tpu.memory_space<vmem>>, vector<16x32xf32>
      %c0_12 = arith.constant 0 : index
      %c0_13 = arith.constant 0 : index
      %13 = vector.load %arg5[%c0_12, %c0_13] : memref<1x32xf32, #tpu.memory_space<vmem>>, vector<1x32xf32>
      %14 = vector.broadcast %13 : vector<1x32xf32> to vector<16x32xf32>
      %15 = arith.addf %12, %14 : vector<16x32xf32>
      %16 = arith.truncf %15 : vector<16x32xf32> to vector<16x32xbf16>
      %c0_14 = arith.constant 0 : index
      %c0_15 = arith.constant 0 : index
      %17 = vector.load %arg6[%c0_14, %c0_15] : memref<16x32xbf16, #tpu.memory_space<vmem>>, vector<16x32xbf16>
      tpu.vector_store %arg6[%c0_14, %c0_15], %16 {strides = array<i32>} : memref<16x32xbf16, #tpu.memory_space<vmem>>, vector<16x32xbf16>,
    } else {
    }
    return
  }
  func.func @transform_0(%arg0: i32, %arg1: i32, %arg2: i32) -> (i32, i32) {
    %c0_i32 = arith.constant 0 : i32
    return %arg0, %arg2 : i32, i32
  }
  func.func @transform_1(%arg0: i32, %arg1: i32, %arg2: i32) -> (i32, i32) {
    %c0_i32 = arith.constant 0 : i32
    return %arg2, %arg1 : i32, i32
  }
  func.func @transform_2(%arg0: i32, %arg1: i32, %arg2: i32) -> (i32, i32) {
    %c0_i32 = arith.constant 0 : i32
    %c0_i32_0 = arith.constant 0 : i32
    return %c0_i32, %arg1 : i32, i32
  }
  func.func @transform_3(%arg0: i32, %arg1: i32, %arg2: i32) -> (i32, i32) {
    %c0_i32 = arith.constant 0 : i32
    return %arg0, %arg1 : i32, i32
  }
}

</mosaic_0001>

<llo_original>
// kernel: tpu_custom_call.1
$region0: #{tpu_custom_call.1}
  #allocation0 [shape = 'u32[]', space=smem, size = 0x4, offset = 0x4, fixed_abs, tag = 'smem constant byte address 0x4 - core index']
  #allocation1 [shape = 'u32[144,128]{1,0:T(1,128)}', space=vmem, size = 0x12000, scoped, tag = 'internal scratch']
  #allocation2 [shape = 'f32[16,32]{1,0:T(8,128)}', space=vmem, size = 0x2000, scoped, tag = 'scratch operand']
  %s0 = inlined_call_operand.hbm [shape: bf16[16,32], index: 0, kind: input, shape index: {}]
  %s1 = inlined_call_operand.hbm [shape: bf16[32,32], index: 1, kind: input, shape index: {}]
  %s2 = inlined_call_operand.vmem [shape: f32[1,32], index: 2, kind: input, shape index: {}]
  %s3 = inlined_call_operand.hbm [shape: bf16[16,32], index: 3, kind: output, shape index: {}]
  %s4 = sld [smem:[#allocation0]]
  $region38: #{tpu_custom_call.1} parent=0
    _
  %s6 = ssub.s32 1, %s4
  %s7 = scalar_select 0, %s6, %s4
  $region1: #{tpu_custom_call.1} parent=0
    #allocation3 [shape = 'u8[4096]{0}', space=vmem, size = 0x1000, scoped, tag = 'input window, operand 0, single buffered']
    #allocation4 [shape = 's32[1]{0}', space=sflag, size = 0x4, scoped, tag = 'scoped memory for tpu_custom_call.1']
    #allocation5 [shape = 's32[1]{0}', space=sflag, size = 0x4, scoped, tag = 'scoped memory for tpu_custom_call.1']
    #allocation6 [shape = 'u8[8192]{0}', space=vmem, size = 0x2000, scoped, tag = 'input window, operand 1, single buffered']
    #allocation7 [shape = 's32[1]{0}', space=sflag, size = 0x4, scoped, tag = 'scoped memory for tpu_custom_call.1']
    #allocation8 [shape = 'u8[4096]{0}', space=vmem, size = 0x1000, scoped, tag = 'output window, operand 0, single buffered']
    %8 = vsyncpa [#allocation4], 0
    %9 = vsyncpa [#allocation7], 0
    %10 = vsyncpa [#allocation5], 0
    // Predicated region
    $region2: #{tpu_custom_call.1} parent=1 // pred_check
      _
    $region3: #{tpu_custom_call.1} parent=1 // pred_check_branch
      %12 = sbr.rel (0) target = $region5
    $region4: #{tpu_custom_call.1} parent=1 // pred_region
      %s14 = ssub.s32 128, 128
      %15 = vsyncadd [#allocation4], %s14
      %s16 = sshll.u32 [#allocation3], 4
      %s17 = int_to_ptr.vmem [resolvable:$true] %s16
      %22 = dma.hbm_to_vmem [thread:$0]  %s0, 128, %s17, [#allocation4], 64, 64, 4
    $region5: #{tpu_custom_call.1} parent=1 // pred_fallthru
      _
    // Predicated region
    $region6: #{tpu_custom_call.1} parent=1 // pred_check
      _
    $region7: #{tpu_custom_call.1} parent=1 // pred_check_branch
      %24 = sbr.rel (0) target = $region9
    $region8: #{tpu_custom_call.1} parent=1 // pred_region
      %s26 = ssub.s32 256, 256
      %27 = vsyncadd [#allocation7], %s26
      %s28 = sshll.u32 [#allocation6], 4
      %s29 = int_to_ptr.vmem [resolvable:$true] %s28
      %34 = dma.hbm_to_vmem [thread:$0]  %s1, 256, %s29, [#allocation7], 64, 64, 4
    $region9: #{tpu_custom_call.1} parent=1 // pred_fallthru
      _
    // Predicated region
    $region10: #{tpu_custom_call.1} parent=1 // pred_check
      _
    $region11: #{tpu_custom_call.1} parent=1 // pred_check_branch
      %36 = sbr.rel (0) target = $region13
    $region12: #{tpu_custom_call.1} parent=1 // pred_region
      _
    $region13: #{tpu_custom_call.1} parent=1 // pred_fallthru
      _
    // Predicated region
    $region14: #{tpu_custom_call.1} parent=1 // pred_check
      _
    $region15: #{tpu_custom_call.1} parent=1 // pred_check_branch
      %38 = sbr.rel (0) target = $region17
    $region16: #{tpu_custom_call.1} parent=1 // pred_region
      %39 = dma.done [#allocation4], 128
    $region17: #{tpu_custom_call.1} parent=1 // pred_fallthru
      _
    // Predicated region
    $region18: #{tpu_custom_call.1} parent=1 // pred_check
      _
    $region19: #{tpu_custom_call.1} parent=1 // pred_check_branch
      %41 = sbr.rel (0) target = $region21
    $region20: #{tpu_custom_call.1} parent=1 // pred_region
      %42 = dma.done [#allocation7], 256
    $region21: #{tpu_custom_call.1} parent=1 // pred_fallthru
      _
    %p44 = scmp.eq.s32.totalorder 0, 0
    // Predicated region
    $region22: #{tpu_custom_call.1} parent=1 // pred_check
      %p45 = pneg %p44
    $region23: #{tpu_custom_call.1} parent=1 // pred_check_branch
      %47 = sbr.rel (%p45) target = $region25
    $region24: #{tpu_custom_call.1} parent=1 // pred_region
      %vm48 = vcmask 261120
      %49 = vst.msk [vmem:[#allocation2] sm:$0xff] %vm48, 0.0
      %50 = vst.msk [vmem:[#allocation2 + $0x8] sm:$0xff] %vm48, 0.0
    $region25: #{tpu_custom_call.1} parent=1 // pred_fallthru
      _
    %v51 = vld [vmem:[#allocation2] sm:$0xff]
    %v52 = vld [vmem:[#allocation2 + $0x8] sm:$0xff]
    %v53 = vld [vmem:[#allocation3] sm:$0xf]
    %v54 = vld [vmem:[#allocation3 + $0x4] sm:$0xf]
    %v55 = vld [vmem:[#allocation6] sm:$0xf]
    %v56 = vld [vmem:[#allocation6 + $0x4] sm:$0xf]
    %v57 = vld [vmem:[#allocation6 + $0x8] sm:$0xf]
    %v58 = vld [vmem:[#allocation6 + $0xc] sm:$0xf]
    %v61 = vunpack.c.l.b16 %v53
    %v62 = vunpack.c.l.b16 %v54
    %v63 = vpack.c.b16 %v62, %v61
    %v68 = vunpack.c.l.b16 %v55
    %v69 = vunpack.c.l.b16 %v56
    %v70 = vunpack.c.l.b16 %v57
    %v71 = vunpack.c.l.b16 %v58
    %v72 = vpack.c.b16 %v69, %v68
    %v73 = vpack.c.b16 %v71, %v70
    %vm76 = vcmask 261120
    %v78 = vsel %vm76, %v63, 0
    %80 = vmatprep.subr.bf16.mxu0 0
    %81 = vmatpush1.bf16.msra.mxu0 %v72
    %82 = vmatprep.subr.bf16.mxu0 0
    %83 = vmatpush1.bf16.msra.mxu0 %v73
    %84 = vmatprep.subr.bf16.mxu0 0
    %85 = vmatpush1.bf16.msra.mxu0 0
    %86 = vmatprep.subr.bf16.mxu0 0
    %87 = vmatpush1.bf16.msra.mxu0 0
    %88 = vmatprep.subr.bf16.mxu0 0
    %89 = vmatpush1.bf16.msra.mxu0 0
    %90 = vmatprep.subr.bf16.mxu0 0
    %91 = vmatpush1.bf16.msra.mxu0 0
    %92 = vmatprep.subr.bf16.mxu0 0
    %93 = vmatpush1.bf16.msra.mxu0 0
    %94 = vmatprep.subr.bf16.mxu0 0
    %95 = vmatpush1.bf16.msra.mxu0 0
    %96 = vmatprep.subr.bf16.mxu0 0
    %97 = vmatpush1.bf16.msra.mxu0 0
    %98 = vmatprep.subr.bf16.mxu0 0
    %99 = vmatpush1.bf16.msra.mxu0 0
    %100 = vmatprep.subr.bf16.mxu0 0
    %101 = vmatpush1.bf16.msra.mxu0 0
    %102 = vmatprep.subr.bf16.mxu0 0
    %103 = vmatpush1.bf16.msra.mxu0 0
    %104 = vmatprep.subr.bf16.mxu0 0
    %105 = vmatpush1.bf16.msra.mxu0 0
    %106 = vmatprep.subr.bf16.mxu0 0
    %107 = vmatpush1.bf16.msra.mxu0 0
    %108 = vmatprep.subr.bf16.mxu0 0
    %109 = vmatpush1.bf16.msra.mxu0 0
    %110 = vmatprep.subr.bf16.mxu0 0
    %111 = vmatpush1.bf16.msra.mxu0 0
    %112 = vmatprep.mubr.bf16.mxu0 0
    %113 = vmatmul.mubr.bf16.gmra.mrb[0].mxu0 %v78
    %v114 = vpop.f32.mrb[0].mxu0
    %v115 = vadd.f32 0.0, %v114
    %v116 = vpop.f32.mrb[0].mxu0
    %v117 = vpop.f32.mrb[0].mxu0
    %v118 = vadd.f32 0.0, %v117
    %v119 = vpop.f32.mrb[0].mxu0
    %120 = vdwg.mxu0
    %v121 = vadd.f32 %v51, %v115
    %v122 = vadd.f32 %v52, %v118
    %123 = vst.msk [vmem:[#allocation2] sm:$0xff] %vm76, %v121
    %124 = vst.msk [vmem:[#allocation2 + $0x8] sm:$0xff] %vm76, %v122
    // Predicated region
    $region26: #{tpu_custom_call.1} parent=1 // pred_check
      %p125 = pneg %p44
    $region27: #{tpu_custom_call.1} parent=1 // pred_check_branch
      %127 = sbr.rel (%p125) target = $region29
    $region28: #{tpu_custom_call.1} parent=1 // pred_region
      %v128 = vld [vmem:[#allocation2] sm:$0xff]
      %v129 = vld [vmem:[#allocation2 + $0x8] sm:$0xff]
      %v130 = vld [vmem:[%s2] sm:$0x1]
      %v132 = vlaneseq
      %v133 = vshrl.u32 %v132, 7
      %v134 = vsub.s32 0, %v133
      %v135 = vrot.slane %v130, %v134
      %v137 = vadd.f32 %v128, %v135
      %v138 = vadd.f32 %v129, %v135
      %v139 = vpack.c.bf16 %v138, %v137
      %v141 = vunpack.c.l.b16 %v139
      %v142 = vunpack.c.h.b16 %v139
      %v143 = vpack.c.b16 %v141, %v141
      %v144 = vpack.c.b16 %v142, %v142
      %vm147 = vcmask 257024
      %148 = vst.msk [vmem:[#allocation8] sm:$0xf] %vm147, %v143
      %149 = vst.msk [vmem:[#allocation8 + $0x4] sm:$0xf] %vm147, %v144
    $region29: #{tpu_custom_call.1} parent=1 // pred_fallthru
      _
    // Predicated region
    $region30: #{tpu_custom_call.1} parent=1 // pred_check
      _
    $region31: #{tpu_custom_call.1} parent=1 // pred_check_branch
      %151 = sbr.rel (0) target = $region33
    $region32: #{tpu_custom_call.1} parent=1 // pred_region
      %s153 = ssub.s32 128, 128
      %154 = vsyncadd [#allocation5], %s153
      %s155 = sshll.u32 [#allocation8], 4
      %s156 = int_to_ptr.vmem [resolvable:$true] %s155
      %161 = dma.vmem_to_hbm [thread:$0]  %s156, 128, %s3, [#allocation5], 64, 64, 4
    $region33: #{tpu_custom_call.1} parent=1 // pred_fallthru
      _
    // Predicated region
    $region34: #{tpu_custom_call.1} parent=1 // pred_check
      _
    $region35: #{tpu_custom_call.1} parent=1 // pred_check_branch
      %163 = sbr.rel (0) target = $region37
    $region36: #{tpu_custom_call.1} parent=1 // pred_region
      %164 = dma.done [#allocation5], 128
    $region37: #{tpu_custom_call.1} parent=1 // pred_fallthru
      _
    %165 = vsyncpa [#allocation4], 1
    %166 = vsyncpa [#allocation7], 1
    %167 = vsyncpa [#allocation5], 1

</llo_original>
